<compile_context>
chip_gen: v7x
topology: tpu7x:2x2x1
jax: 0.10.0
libtpu: 0.0.40
codegen_flags: <defaults>
</compile_context>

<pallas_src>
import functools
import math

import jax
import jax.numpy as jnp
from jax.experimental import pallas as pl
from jax.experimental.pallas import tpu as pltpu


def _pick_batch_block(batch, rows_per_item, target_rows=256):
    """Largest divisor of `batch` such that block*rows_per_item ~ target_rows."""
    want = max(1, target_rows // max(rows_per_item, 1))
    best = 1
    for cand in range(1, min(batch, want) + 1):
        if batch % cand == 0:
            best = cand
    return best


# ----------------------------------------------------------------------------
# 1. DataEmbedding: circular Conv1d(k=3, no bias) + positional encoding.
#    Circular taps built in-kernel; one (blk*T, 3C) @ (3C, D) bf16 MXU push.
# ----------------------------------------------------------------------------
def _embedding_kernel(x_ref, w_ref, pe_ref, o_ref, *, bblk):
    x = x_ref[...]                                        # (blk, T, C) f32
    T = x.shape[1]
    D = w_ref.shape[-1]
    # circular taps t-1 / t / t+1 (per sequence) built in-kernel
    xm1 = jnp.concatenate([x[:, -1:, :], x[:, :-1, :]], axis=1)
    xp1 = jnp.concatenate([x[:, 1:, :], x[:, :1, :]], axis=1)
    taps = jnp.concatenate([xm1, x, xp1], axis=-1)        # (blk, T, 3C)
    taps = taps.reshape(bblk * T, taps.shape[-1]).astype(w_ref.dtype)
    y = jnp.dot(taps, w_ref[...], preferred_element_type=jnp.float32)
    y = y.reshape(bblk, T, D) + pe_ref[...][None]         # add PE once
    o_ref[...] = y.reshape(bblk, T * D).astype(o_ref.dtype)


def embedding(x, emb_w, pe, *, bblk):
    B, T, C = x.shape
    D = emb_w.shape[-1]
    return pl.pallas_call(
        functools.partial(_embedding_kernel, bblk=bblk),
        out_shape=jax.ShapeDtypeStruct((B, T * D), jnp.float32),
        grid=(B // bblk,),
        in_specs=[pl.BlockSpec((bblk, T, C), lambda b: (b, 0, 0)),
                  pl.BlockSpec((3 * C, D), lambda b: (0, 0)),   # grid-invariant
                  pl.BlockSpec((T, D), lambda b: (0, 0))],      # pe, NOT tiled by B
        out_specs=pl.BlockSpec((bblk, T * D), lambda b: (b, 0)),
        compiler_params=pltpu.CompilerParams(dimension_semantics=("parallel",)),
    )(x, emb_w, pe)


# ----------------------------------------------------------------------------
# 2. Fused encoder STACK: grid = (batch_blocks, layers).  Activation carried in
#    VMEM scratch across the layer axis; weights layer-indexed by index_map.
# ----------------------------------------------------------------------------
def _encoder_stack_kernel(x_ref, wqkv_ref, bqkv_ref, wo_ref, bo_ref,
                          w1_ref, b1_ref, w2_ref, b2_ref,
                          g1_ref, be1_ref, g2_ref, be2_ref,
                          xo_ref, series_ref, act_ref,
                          *, n_heads, bblk, seq_len, eps):
    layer = pl.program_id(1)
    T = seq_len
    D = act_ref.shape[-1]
    dh = D // n_heads
    scale = 1.0 / math.sqrt(dh)

    @pl.when(layer == 0)
    def _():
        act_ref[...] = x_ref[...].reshape(bblk, T, D).reshape(bblk * T, D)

    x = act_ref[...]                                      # (blk*T, D) f32
    xb = x.astype(jnp.bfloat16)

    # fused QKV matmul on the whole (blk*T, D) slab
    qkv = jnp.dot(xb, wqkv_ref[0],
                  preferred_element_type=jnp.float32) + bqkv_ref[0]

    attn_blocks = []
    ctx_blocks = []
    for bi in range(bblk):                                # tiny static loop
        sl = slice(bi * T, (bi + 1) * T)
        q = qkv[sl, 0 * D:1 * D].reshape(T, n_heads, dh).astype(jnp.bfloat16)
        k = qkv[sl, 1 * D:2 * D].reshape(T, n_heads, dh).astype(jnp.bfloat16)
        v = qkv[sl, 2 * D:3 * D].reshape(T, n_heads, dh).astype(jnp.bfloat16)
        sc = jnp.einsum('qhd,khd->hqk', q, k,
                        preferred_element_type=jnp.float32) * scale
        sc = sc - jnp.max(sc, axis=-1, keepdims=True)
        e = jnp.exp(sc)
        attn = e / jnp.sum(e, axis=-1, keepdims=True)     # exact softmax (exported)
        ctx = jnp.einsum('hqk,khd->qhd', attn.astype(jnp.bfloat16), v,
                         preferred_element_type=jnp.float32)
        attn_blocks.append(attn.reshape(1, n_heads * T * T))
        ctx_blocks.append(ctx.reshape(T, D))
    series_ref[0] = jnp.concatenate(attn_blocks, axis=0).astype(series_ref.dtype)
    ctx_all = jnp.concatenate(ctx_blocks, axis=0)         # (blk*T, D)

    new_x = jnp.dot(ctx_all.astype(jnp.bfloat16), wo_ref[0],
                    preferred_element_type=jnp.float32) + bo_ref[0]

    x1 = x + new_x                                        # residual + LN1 (f32)
    mu = jnp.mean(x1, axis=-1, keepdims=True)
    var = jnp.mean((x1 - mu) ** 2, axis=-1, keepdims=True)
    x1 = (x1 - mu) * jax.lax.rsqrt(var + eps) * g1_ref[0] + be1_ref[0]

    y = jnp.dot(x1.astype(jnp.bfloat16), w1_ref[0],
                preferred_element_type=jnp.float32) + b1_ref[0]
    # TODO(synk): PyTorch F.gelu default is exact erf-GELU; tanh approximation
    # kept for robust Mosaic lowering.
    y = jax.nn.gelu(y, approximate=True)
    y = jnp.dot(y.astype(jnp.bfloat16), w2_ref[0],
                preferred_element_type=jnp.float32) + b2_ref[0]

    x2 = x1 + y                                           # residual + LN2 (f32)
    mu2 = jnp.mean(x2, axis=-1, keepdims=True)
    var2 = jnp.mean((x2 - mu2) ** 2, axis=-1, keepdims=True)
    x2 = (x2 - mu2) * jax.lax.rsqrt(var2 + eps) * g2_ref[0] + be2_ref[0]

    act_ref[...] = x2                                     # carry to next layer

    @pl.when(layer == pl.num_programs(1) - 1)
    def _():
        xo_ref[...] = x2.reshape(bblk, T, D).reshape(bblk, T * D).astype(xo_ref.dtype)


def encoder_stack(x_flat, sp, *, n_heads, seq_len, bblk):
    B, TD = x_flat.shape
    D = TD // seq_len
    L = sp["wqkv"].shape[0]
    d_ff = sp["w1"].shape[-1]
    HTT = n_heads * seq_len * seq_len

    def wspec(shape):
        return pl.BlockSpec(shape, lambda b, l: (l, 0, 0))

    out_x, series = pl.pallas_call(
        functools.partial(_encoder_stack_kernel, n_heads=n_heads, bblk=bblk,
                          seq_len=seq_len, eps=1e-5),
        out_shape=(jax.ShapeDtypeStruct((B, TD), jnp.float32),
                   jax.ShapeDtypeStruct((L, B, HTT), jnp.float32)),
        grid=(B // bblk, L),
        in_specs=[pl.BlockSpec((bblk, TD), lambda b, l: (b, 0)),
                  wspec((1, D, 3 * D)), wspec((1, 1, 3 * D)),   # fused QKV
                  wspec((1, D, D)), wspec((1, 1, D)),           # Wo, bo
                  wspec((1, D, d_ff)), wspec((1, 1, d_ff)),     # conv1 (k=1)
                  wspec((1, d_ff, D)), wspec((1, 1, D)),        # conv2 (k=1)
                  wspec((1, 1, D)), wspec((1, 1, D)),           # LN1
                  wspec((1, 1, D)), wspec((1, 1, D))],          # LN2
        out_specs=(pl.BlockSpec((bblk, TD), lambda b, l: (b, 0)),
                   pl.BlockSpec((1, bblk, HTT), lambda b, l: (l, b, 0))),
        scratch_shapes=[pltpu.VMEM((bblk * seq_len, D), jnp.float32)],
        compiler_params=pltpu.CompilerParams(
            dimension_semantics=("parallel", "arbitrary")),
    )(x_flat, sp["wqkv"], sp["bqkv"], sp["wo"], sp["bo"],
      sp["w1"], sp["b1"], sp["w2"], sp["b2"],
      sp["g1"], sp["be1"], sp["g2"], sp["be2"])
    return out_x, series


# ----------------------------------------------------------------------------
# 3. Fused decoder head: final encoder LayerNorm + en2de + Decoder.forward()
#    dense chain + synthetic OTmodel + KL / OT / MSE + output projection.
#    Gridded over batch blocks; everything packed into one 128-wide slab.
# ----------------------------------------------------------------------------
def _decoder_kernel(enc_ref, gn_ref, bn_ref,
                    w_ed_ref, b_ed_ref,
                    w_h1_ref, b_h1_ref, w_h2_ref, b_h2_ref,
                    w_mam_ref, b_mam_ref, w_mal_ref, b_mal_ref,
                    w_zm_ref, b_zm_ref, w_zl_ref, b_zl_ref,
                    w_ote_ref, b_ote_ref, w_ott_ref, b_ott_ref,
                    w_otr_ref, b_otr_ref,
                    w_dzm1_ref, b_dzm1_ref, w_dzm2_ref, b_dzm2_ref,
                    w_dzl1_ref, b_dzl1_ref, w_dzl2_ref, b_dzl2_ref,
                    w_dx1_ref, b_dx1_ref, w_dx2_ref, b_dx2_ref,
                    w_pr_ref, b_pr_ref,
                    slab_ref, *, bblk, seq_len, d_model, eps):
    def lin(t, w_ref, b_ref):
        return jnp.dot(t, w_ref[...],
                       preferred_element_type=jnp.float32) + b_ref[...]

    T, D = seq_len, d_model
    x = enc_ref[...].reshape(bblk, T, D).reshape(bblk * T, D)

    # final encoder LayerNorm
    mu = jnp.mean(x, axis=-1, keepdims=True)
    var = jnp.mean((x - mu) ** 2, axis=-1, keepdims=True)
    xn = (x - mu) * jax.lax.rsqrt(var + eps) * gn_ref[...] + bn_ref[...]

    h = lin(xn, w_ed_ref, b_ed_ref)                       # en2de -> (rows, d_vae)
    h1 = lin(h, w_h1_ref, b_h1_ref)
    h2 = lin(h1, w_h2_ref, b_h2_ref)
    ma_mean = lin(h2, w_mam_ref, b_mam_ref)
    ma_logvar = lin(h2, w_mal_ref, b_mal_ref)
    ma_sample = ma_mean            # TODO(synk): training-mode reparameterize noise path
    h_box = jnp.concatenate([h1, ma_sample], axis=-1)
    z_mean = lin(h_box, w_zm_ref, b_zm_ref)
    z_logvar = lin(h_box, w_zl_ref, b_zl_ref)
    z_sample = z_mean                                      # eval-mode reparameterize

    # --- synthetic OTmodel (TODO(synk): real OTmodel source unavailable) ---
    out = lin(ma_sample, w_ote_ref, b_ote_ref)             # 'embadding'
    tl = lin(ma_sample, w_ott_ref, b_ott_ref)
    tl = tl - jnp.max(tl, axis=-1, keepdims=True)
    te = jnp.exp(tl)
    theta = te / jnp.sum(te, axis=-1, keepdims=True)       # exact softmax
    recon = lin(out, w_otr_ref, b_otr_ref)
    otloss = jnp.mean(out * out, keepdims=True)            # (1, 1)
    loss_mse = jnp.mean((recon - ma_sample) ** 2, keepdims=True)

    relu = lambda t: jnp.maximum(t, 0.0)
    dz_mean = lin(relu(lin(out, w_dzm1_ref, b_dzm1_ref)), w_dzm2_ref, b_dzm2_ref)
    dz_logvar = lin(relu(lin(out, w_dzl1_ref, b_dzl1_ref)), w_dzl2_ref, b_dzl2_ref)
    dx_mean = lin(relu(lin(z_sample, w_dx1_ref, b_dx1_ref)), w_dx2_ref, b_dx2_ref)

    # mean over dim=1 then mean == global mean (equal group sizes)
    KL_c = jnp.mean(-0.5 * (1.0 - ma_mean ** 2 + ma_logvar - jnp.exp(ma_logvar)),
                    keepdims=True)
    # KL_z in log-space (exact, overflow-safe; no exp/exp divide-then-log)
    dlv = dz_logvar - z_logvar
    KL_z = jnp.mean(0.5 * ((dz_mean - z_mean) ** 2 * jnp.exp(-z_logvar)
                           + (jnp.exp(dlv) - 1.0 - dlv)), keepdims=True)

    # projection of decoder_x_mean_out.view(blk, -1)
    proj = lin(dx_mean.reshape(bblk, T * dx_mean.shape[-1]), w_pr_ref, b_pr_ref)
    theta_flat = theta.reshape(bblk, T * theta.shape[-1])

    ones = jnp.ones((bblk, 1), jnp.float32)
    pieces = [proj, theta_flat,
              ones * KL_c, ones * KL_z, ones * otloss, ones * loss_mse]
    used = proj.shape[-1] + theta_flat.shape[-1] + 4
    pad = slab_ref.shape[-1] - used
    if pad > 0:
        pieces.append(jnp.zeros((bblk, pad), jnp.float32))
    slab_ref[...] = jnp.concatenate(pieces, axis=-1).astype(slab_ref.dtype)


def decoder_head(params, enc_flat, cfg, *, bblk):
    B = enc_flat.shape[0]
    T, D = cfg["T"], cfg["d_model"]
    c_out, dcc = cfg["c_out"], cfg["d_c"]
    used = c_out * T + dcc * T + 4
    slab_w = pl.cdiv(used, 128) * 128                      # lane-dense output
    p = params["decoder"]

    weights = [params["enc_norm_g"], params["enc_norm_b"],
               *params["en2de"],
               *p["encode_h1"], *p["encode_h2"],
               *p["ma_mean_fc"], *p["ma_logvar_fc"],
               *p["z_mean_fc"], *p["z_logvar_fc"],
               *p["ot_embed"], *p["ot_theta"], *p["ot_recon"],
               *p["dz_mean1"], *p["dz_mean2"],
               *p["dz_lv1"], *p["dz_lv2"],
               *p["dx1"], *p["dx2"],
               *params["projection"]]

    def full_spec(a):
        nd = a.ndim
        return pl.BlockSpec(a.shape, lambda b, _nd=nd: (0,) * _nd)

    slab = pl.pallas_call(
        functools.partial(_decoder_kernel, bblk=bblk, seq_len=T,
                          d_model=D, eps=1e-5),
        out_shape=jax.ShapeDtypeStruct((B, slab_w), jnp.float32),
        grid=(B // bblk,),
        in_specs=[pl.BlockSpec((bblk, T * D), lambda b: (b, 0))]
                 + [full_spec(w) for w in weights],
        out_specs=pl.BlockSpec((bblk, slab_w), lambda b: (b, 0)),
        compiler_params=pltpu.CompilerParams(dimension_semantics=("parallel",)),
    )(enc_flat, *weights)

    proj = slab[:, :c_out * T]                             # (B, c_out*T)
    theta = slab[:, c_out * T:c_out * T + dcc * T].reshape(B * T, dcc)
    base = c_out * T + dcc * T
    # per-block means were replicated across each block's rows; equal block
    # sizes => mean over rows == global mean
    scal = jnp.mean(slab[:, base:base + 4], axis=0)        # KL_c, KL_z, OT, MSE
    return proj, theta, scal


# ----------------------------------------------------------------------------
# parameter init (deterministic, matches PyTorch Linear default fan-in scaling)
# ----------------------------------------------------------------------------
def positional_encoding(T, d_model):
    pos = jnp.arange(T, dtype=jnp.float32)[:, None]
    div = jnp.exp(jnp.arange(0, d_model, 2, dtype=jnp.float32)
                  * (-math.log(10000.0) / d_model))
    pe = jnp.zeros((T, d_model), jnp.float32)
    pe = pe.at[:, 0::2].set(jnp.sin(pos * div))
    pe = pe.at[:, 1::2].set(jnp.cos(pos * div))
    return pe


def init_params(key, cfg):
    keys = iter(jax.random.split(key, 64))

    def lin(fan_in, fan_out):
        kw, kb = jax.random.split(next(keys))
        bound = 1.0 / math.sqrt(fan_in)
        w = jax.random.uniform(kw, (fan_in, fan_out), jnp.float32, -bound, bound)
        b = jax.random.uniform(kb, (1, fan_out), jnp.float32, -bound, bound)
        return (w, b)

    D, dff = cfg["d_model"], cfg["d_ff"]
    dv, dc, dcc = cfg["d_vae"], cfg["d_model_concept"], cfg["d_c"]
    T, enc_in, c_out, L = cfg["T"], cfg["enc_in"], cfg["c_out"], cfg["e_layers"]

    per_layer = []
    for _ in range(L):
        (wq, bq), (wk, bk), (wv, bv) = lin(D, D), lin(D, D), lin(D, D)
        wo, bo = lin(D, D)
        w1, b1 = lin(D, dff)
        w2, b2 = lin(dff, D)
        per_layer.append(dict(
            wqkv=jnp.concatenate([wq, wk, wv], axis=1),
            bqkv=jnp.concatenate([bq, bk, bv], axis=1),
            wo=wo, bo=bo, w1=w1, b1=b1, w2=w2, b2=b2,
            g1=jnp.ones((1, D)), be1=jnp.zeros((1, D)),
            g2=jnp.ones((1, D)), be2=jnp.zeros((1, D))))

    def stack(name, dtype=jnp.float32):
        return jnp.stack([lp[name] for lp in per_layer]).astype(dtype)

    enc_layers = dict(
        wqkv=stack("wqkv", jnp.bfloat16), bqkv=stack("bqkv"),     # bf16 MXU weights
        wo=stack("wo", jnp.bfloat16), bo=stack("bo"),
        w1=stack("w1", jnp.bfloat16), b1=stack("b1"),
        w2=stack("w2", jnp.bfloat16), b2=stack("b2"),
        g1=stack("g1"), be1=stack("be1"), g2=stack("g2"), be2=stack("be2"))

    decoder = dict(
        encode_h1=lin(dv, dv), encode_h2=lin(dv, dv),
        ma_mean_fc=lin(dv, dc), ma_logvar_fc=lin(dv, dc),
        z_mean_fc=lin(dv + dc, dv), z_logvar_fc=lin(dv + dc, dv),
        dz_mean1=lin(dcc, dv), dz_mean2=lin(dv, dv),
        dz_lv1=lin(dcc, dv), dz_lv2=lin(dv, dv),
        dx1=lin(dv, dv), dx2=lin(dv, dv),
        # TODO(synk): OTmodel source not provided; synthetic linear stand-ins.
        ot_embed=lin(dc, dcc), ot_theta=lin(dc, dcc), ot_recon=lin(dcc, dc),
    )

    return dict(
        emb_w=(0.1 * jax.random.normal(next(keys), (3 * enc_in, D), jnp.float32)
               ).astype(jnp.bfloat16),
        pe=positional_encoding(T, D),
        enc_layers=enc_layers,
        enc_norm_g=jnp.ones((1, D)), enc_norm_b=jnp.zeros((1, D)),
        en2de=lin(D, dv),
        decoder=decoder,
        # TODO(synk): at production sizes keep this (d_vae*T, c_out*T) weight in
        # HBM (memory_space=pl.ANY) and K-tile the projection matmul.
        projection=lin(dv * T, c_out * T),
    )


# ----------------------------------------------------------------------------
# full forward
# ----------------------------------------------------------------------------
def anomaly_transformer_forward(params, x, cfg):
    B, T, _ = x.shape
    H, c_out, L = cfg["n_heads"], cfg["c_out"], cfg["e_layers"]
    bblk = _pick_batch_block(B, T)

    enc = embedding(x, params["emb_w"], params["pe"], bblk=bblk)      # (B, T*D)
    enc, series_all = encoder_stack(enc, params["enc_layers"],
                                    n_heads=H, seq_len=T, bblk=bblk)  # (L,B,H*T*T)
    series_list = [series_all[l].reshape(B, H, T, T) for l in range(L)]

    proj, theta, scal = decoder_head(params, enc, cfg, bblk=bblk)
    enc_out = proj.reshape(B, T, c_out)                               # == .view(B, T, -1)
    KL_c, KL_z, otloss, loss_mse = scal[0], scal[1], scal[2], scal[3]

    other = {"p_xj": theta, "theta": theta}
    return (enc_out, series_list, otloss, loss_mse, KL_c, KL_z, other)


# ----------------------------------------------------------------------------
if __name__ == "__main__":
    cfg = dict(B=2, T=8, enc_in=4, c_out=4, d_model=32, n_heads=4, d_ff=64,
               e_layers=2, d_vae=16, d_model_concept=8, d_c=8)

    root = jax.random.PRNGKey(0)
    pkey, xkey = jax.random.split(root)
    params = init_params(pkey, cfg)
    x = jax.random.normal(xkey, (cfg["B"], cfg["T"], cfg["enc_in"]), jnp.float32)

    out = anomaly_transformer_forward(params, x, cfg)
    jax.block_until_ready(out)

    enc_out = out[0]
    assert enc_out.shape == (cfg["B"], cfg["T"], cfg["c_out"])
    assert out[1][0].shape == (cfg["B"], cfg["n_heads"], cfg["T"], cfg["T"])
    assert out[6]["theta"].shape == (cfg["B"] * cfg["T"], cfg["d_c"])
    print("KERNEL_OK")
</pallas_src>

<mosaic_0001>
module attributes {stable_mosaic.version = 11 : i64} {
  func.func @_embedding_kernel(%arg0: i32, %arg1: memref<2x8x4xf32, #tpu.memory_space<vmem>>, %arg2: memref<12x32xbf16, #tpu.memory_space<vmem>>, %arg3: memref<8x32xf32, #tpu.memory_space<vmem>>, %arg4: memref<2x256xf32, #tpu.memory_space<vmem>>) attributes {dimension_semantics = [#tpu.dimension_semantics<parallel>], iteration_bounds = array<i64: 1>, scalar_prefetch = 0 : i64, scratch_operands = 0 : i64, tpu.core_type = #tpu.core_type<tc>, window_params = [{transform_indices = @transform_0, window_bounds = array<i64: 2, 8, 4>}, {pipeline_mode = #tpu.pipeline_mode<synchronous>, transform_indices = @transform_1, window_bounds = array<i64: 12, 32>}, {pipeline_mode = #tpu.pipeline_mode<synchronous>, transform_indices = @transform_2, window_bounds = array<i64: 8, 32>}, {transform_indices = @transform_3, window_bounds = array<i64: 2, 256>}]} {
    %c0 = arith.constant 0 : index
    %c0_0 = arith.constant 0 : index
    %c0_1 = arith.constant 0 : index
    %0 = vector.load %arg1[%c0, %c0_0, %c0_1] : memref<2x8x4xf32, #tpu.memory_space<vmem>>, vector<2x8x4xf32>
    %1 = vector.extract_strided_slice %0 {offsets = [0, 7, 0], sizes = [2, 1, 4], strides = [1, 1, 1]} : vector<2x8x4xf32> to vector<2x1x4xf32>
    %2 = vector.extract_strided_slice %0 {offsets = [0, 0, 0], sizes = [2, 7, 4], strides = [1, 1, 1]} : vector<2x8x4xf32> to vector<2x7x4xf32>
    %3 = tpu.concatenate %1, %2 in 1 : vector<2x1x4xf32>, vector<2x7x4xf32> -> vector<2x8x4xf32>
    %4 = vector.extract_strided_slice %0 {offsets = [0, 1, 0], sizes = [2, 7, 4], strides = [1, 1, 1]} : vector<2x8x4xf32> to vector<2x7x4xf32>
    %5 = vector.extract_strided_slice %0 {offsets = [0, 0, 0], sizes = [2, 1, 4], strides = [1, 1, 1]} : vector<2x8x4xf32> to vector<2x1x4xf32>
    %6 = tpu.concatenate %4, %5 in 1 : vector<2x7x4xf32>, vector<2x1x4xf32> -> vector<2x8x4xf32>
    %7 = tpu.concatenate %3, %0, %6 in 2 : vector<2x8x4xf32>, vector<2x8x4xf32>, vector<2x8x4xf32> -> vector<2x8x12xf32>
    %8 = vector.shape_cast %7 : vector<2x8x12xf32> to vector<16x12xf32>
    %9 = arith.truncf %8 : vector<16x12xf32> to vector<16x12xbf16>
    %c0_2 = arith.constant 0 : index
    %c0_3 = arith.constant 0 : index
    %10 = vector.load %arg2[%c0_2, %c0_3] : memref<12x32xbf16, #tpu.memory_space<vmem>>, vector<12x32xbf16>
    %cst = arith.constant dense<0.000000e+00> : vector<16x32xf32>
    %11 = tpu.matmul %9, %10, %cst {dimension_numbers = #tpu.dot_dimension_numbers<[1], [0], [0], [1], [0, 0, 1, 1], [], []>} : vector<16x12xbf16>, vector<12x32xbf16>, vector<16x32xf32> -> vector<16x32xf32>
    %12 = vector.shape_cast %11 : vector<16x32xf32> to vector<2x8x32xf32>
    %c0_4 = arith.constant 0 : index
    %c0_5 = arith.constant 0 : index
    %13 = vector.load %arg3[%c0_4, %c0_5] : memref<8x32xf32, #tpu.memory_space<vmem>>, vector<8x32xf32>
    %14 = vector.shape_cast %13 : vector<8x32xf32> to vector<1x8x32xf32>
    %15 = vector.broadcast %14 : vector<1x8x32xf32> to vector<2x8x32xf32>
    %16 = arith.addf %12, %15 : vector<2x8x32xf32>
    %17 = vector.shape_cast %16 : vector<2x8x32xf32> to vector<2x256xf32>
    %c0_6 = arith.constant 0 : index
    %c0_7 = arith.constant 0 : index
    %18 = vector.load %arg4[%c0_6, %c0_7] : memref<2x256xf32, #tpu.memory_space<vmem>>, vector<2x256xf32>
    tpu.vector_store %arg4[%c0_6, %c0_7], %17 {strides = array<i32>} : memref<2x256xf32, #tpu.memory_space<vmem>>, vector<2x256xf32>,
    return
  }
  func.func @transform_0(%arg0: i32) -> (i32, i32, i32) {
    %c0_i32 = arith.constant 0 : i32
    %c0_i32_0 = arith.constant 0 : i32
    %c0_i32_1 = arith.constant 0 : i32
    return %arg0, %c0_i32, %c0_i32_0 : i32, i32, i32
  }
  func.func @transform_1(%arg0: i32) -> (i32, i32) {
    %c0_i32 = arith.constant 0 : i32
    %c0_i32_0 = arith.constant 0 : i32
    %c0_i32_1 = arith.constant 0 : i32
    return %c0_i32, %c0_i32_0 : i32, i32
  }
  func.func @transform_2(%arg0: i32) -> (i32, i32) {
    %c0_i32 = arith.constant 0 : i32
    %c0_i32_0 = arith.constant 0 : i32
    %c0_i32_1 = arith.constant 0 : i32
    return %c0_i32, %c0_i32_0 : i32, i32
  }
  func.func @transform_3(%arg0: i32) -> (i32, i32) {
    %c0_i32 = arith.constant 0 : i32
    %c0_i32_0 = arith.constant 0 : i32
    return %arg0, %c0_i32 : i32, i32
  }
}

</mosaic_0001>

<llo_original>
// kernel: tpu_custom_call.1
$region0: #{tpu_custom_call.1}
  #allocation0 [shape = 'u32[]', space=smem, size = 0x4, offset = 0x4, fixed_abs, tag = 'smem constant byte address 0x4 - core index']
  #allocation1 [shape = 'u32[144,128]{1,0:T(1,128)}', space=vmem, size = 0x12000, scoped, tag = 'internal scratch']
  %s0 = inlined_call_operand.vmem [shape: f32[2,8,4], index: 0, kind: input, shape index: {}]
  %s1 = inlined_call_operand.vmem [shape: bf16[12,32], index: 1, kind: input, shape index: {}]
  %s2 = inlined_call_operand.vmem [shape: f32[8,32], index: 2, kind: input, shape index: {}]
  %s3 = inlined_call_operand.hbm [shape: f32[2,256], index: 3, kind: output, shape index: {}]
  %s4 = sld [smem:[#allocation0]]
  $region22: #{tpu_custom_call.1} parent=0
    _
  %s6 = ssub.s32 1, %s4
  %s7 = scalar_select 0, %s6, %s4
  $region1: #{tpu_custom_call.1} parent=0
    #allocation2 [shape = 'u8[2048]{0}', space=vmem, size = 0x800, scoped, tag = 'output window, operand 0, single buffered']
    #allocation3 [shape = 's32[1]{0}', space=sflag, size = 0x4, scoped, tag = 'scoped memory for tpu_custom_call.1']
    %8 = vsyncpa [#allocation3], 0
    // Predicated region
    $region2: #{tpu_custom_call.1} parent=1 // pred_check
      _
    $region3: #{tpu_custom_call.1} parent=1 // pred_check_branch
      %10 = sbr.rel (0) target = $region5
    $region4: #{tpu_custom_call.1} parent=1 // pred_region
      _
    $region5: #{tpu_custom_call.1} parent=1 // pred_fallthru
      _
    // Predicated region
    $region6: #{tpu_custom_call.1} parent=1 // pred_check
      _
    $region7: #{tpu_custom_call.1} parent=1 // pred_check_branch
      %12 = sbr.rel (0) target = $region9
    $region8: #{tpu_custom_call.1} parent=1 // pred_region
      _
    $region9: #{tpu_custom_call.1} parent=1 // pred_fallthru
      _
    // Predicated region
    $region10: #{tpu_custom_call.1} parent=1 // pred_check
      _
    $region11: #{tpu_custom_call.1} parent=1 // pred_check_branch
      %14 = sbr.rel (0) target = $region13
    $region12: #{tpu_custom_call.1} parent=1 // pred_region
      _
    $region13: #{tpu_custom_call.1} parent=1 // pred_fallthru
      _
    %v16 = vld [vmem:[%s0] sm:$0xff]
    %v17 = vld [vmem:[%s0 + $0x8] sm:$0xff]
    %v20 = vrot.slane %v16, 7
    %v21 = vrot.slane %v17, 7
    %vm24 = vcmask 1040384
    %v25 = vsel %vm24, %v20, %v20
    %v26 = vsel %vm24, %v21, %v21
    %v27 = vrot.slane %v16, 1
    %v28 = vrot.slane %v17, 1
    %vm31 = vcmask 1046528
    %v32 = vsel %vm31, %v27, %v27
    %v33 = vsel %vm31, %v28, %v28
    %34 = vrot.lane.b32.xlu0 %v16, 4
    %v35 = vpop.permute.xlu0 %34
    %36 = vrot.lane.b32.xlu0 %v17, 4
    %v37 = vpop.permute.xlu0 %36
    %42 = vrot.lane.b32.xlu0 %v32, 8
    %v43 = vpop.permute.xlu0 %42
    %44 = vrot.lane.b32.xlu0 %v33, 8
    %v45 = vpop.permute.xlu0 %44
    %vm48 = vcmask 31744
    %v49 = vsel %vm48, %v25, %v35
    %v50 = vsel %vm48, %v26, %v37
    %vm51 = vcmask 64512
    %v52 = vsel %vm51, %v49, %v43
    %v53 = vsel %vm51, %v50, %v45
    %v54 = vpack.c.bf16 %v53, %v52
    %v55 = vld [vmem:[%s1] sm:$0xf]
    %v56 = vld [vmem:[%s1 + $0x4] sm:$0x3]
    %v59 = vunpack.c.l.b16 %v55
    %v60 = vunpack.c.l.b16 %v56
    %v61 = vpack.c.b16 %v60, %v59
    %vm62 = vcmask 97280
    %v64 = vsel %vm62, %v54, 0
    %vm66 = vcmask 1045504
    %v68 = vsel %vm66, %v61, 0
    %70 = vmatprep.subr.bf16.mxu0 0
    %71 = vmatpush1.bf16.msra.mxu0 %v68
    %72 = vmatprep.subr.bf16.mxu0 0
    %73 = vmatpush1.bf16.msra.mxu0 0
    %74 = vmatprep.subr.bf16.mxu0 0
    %75 = vmatpush1.bf16.msra.mxu0 0
    %76 = vmatprep.subr.bf16.mxu0 0
    %77 = vmatpush1.bf16.msra.mxu0 0
    %78 = vmatprep.subr.bf16.mxu0 0
    %79 = vmatpush1.bf16.msra.mxu0 0
    %80 = vmatprep.subr.bf16.mxu0 0
    %81 = vmatpush1.bf16.msra.mxu0 0
    %82 = vmatprep.subr.bf16.mxu0 0
    %83 = vmatpush1.bf16.msra.mxu0 0
    %84 = vmatprep.subr.bf16.mxu0 0
    %85 = vmatpush1.bf16.msra.mxu0 0
    %86 = vmatprep.subr.bf16.mxu0 0
    %87 = vmatpush1.bf16.msra.mxu0 0
    %88 = vmatprep.subr.bf16.mxu0 0
    %89 = vmatpush1.bf16.msra.mxu0 0
    %90 = vmatprep.subr.bf16.mxu0 0
    %91 = vmatpush1.bf16.msra.mxu0 0
    %92 = vmatprep.subr.bf16.mxu0 0
    %93 = vmatpush1.bf16.msra.mxu0 0
    %94 = vmatprep.subr.bf16.mxu0 0
    %95 = vmatpush1.bf16.msra.mxu0 0
    %96 = vmatprep.subr.bf16.mxu0 0
    %97 = vmatpush1.bf16.msra.mxu0 0
    %98 = vmatprep.subr.bf16.mxu0 0
    %99 = vmatpush1.bf16.msra.mxu0 0
    %100 = vmatprep.subr.bf16.mxu0 0
    %101 = vmatpush1.bf16.msra.mxu0 0
    %102 = vmatprep.mubr.bf16.mxu0 0
    %103 = vmatmul.mubr.bf16.gmra.mrb[0].mxu0 %v64
    %v104 = vpop.f32.mrb[0].mxu0
    %v105 = vadd.f32 0.0, %v104
    %v106 = vpop.f32.mrb[0].mxu0
    %v107 = vpop.f32.mrb[0].mxu0
    %v108 = vadd.f32 0.0, %v107
    %v109 = vpop.f32.mrb[0].mxu0
    %110 = vdwg.mxu0
    %v111 = vld [vmem:[%s2] sm:$0xff]
    %v112 = vadd.f32 %v105, %v111
    %v113 = vadd.f32 %v108, %v111
    %v114 = vcombine.high %v112, 0.0
    %v116 = vunpack.c.l.s4 1983009808
    %v117 = vunpack.c.0.s8 %v116
    %v118 = vlaneseq
    %v119 = vshrl.u32 %v118, 7
    %v120 = vsub.s32 %v117, %v119
    %v121 = vrot.slane %v112, %v120
    %v123 = vunpack.c.l.s4 1983009808
    %v124 = vunpack.c.0.s8 %v123
    %v125 = vlaneseq
    %v126 = vshrl.u32 %v125, 7
    %v127 = vsub.s32 %v124, %v126
    %v128 = vrot.slane %v114, %v127
    %v129 = vcombine.high %v113, 0.0
    %v131 = vunpack.c.l.s4 1983009808
    %v132 = vunpack.c.0.s8 %v131
    %v133 = vlaneseq
    %v134 = vshrl.u32 %v133, 7
    %v135 = vsub.s32 %v132, %v134
    %v136 = vrot.slane %v113, %v135
    %v138 = vunpack.c.l.s4 1983009808
    %v139 = vunpack.c.0.s8 %v138
    %v140 = vlaneseq
    %v141 = vshrl.u32 %v140, 7
    %v142 = vsub.s32 %v139, %v141
    %v143 = vrot.slane %v129, %v142
    %v144 = vcombine.low %v121, %v136
    %v145 = vcombine.high %v121, %v136
    %v147 = vunpack.c.l.s4 1934713408
    %v148 = vunpack.c.0.s8 %v147
    %v149 = vlaneseq
    %v150 = vshrl.u32 %v149, 7
    %v151 = vsub.s32 %v148, %v150
    %v152 = vrot.slane %v144, %v151
    %v154 = vunpack.c.l.s4 1934713408
    %v155 = vunpack.c.0.s8 %v154
    %v156 = vlaneseq
    %v157 = vshrl.u32 %v156, 7
    %v158 = vsub.s32 %v155, %v157
    %v159 = vrot.slane %v145, %v158
    %v160 = vcombine.low %v128, %v143
    %v161 = vcombine.high %v128, %v143
    %v163 = vunpack.c.l.s4 1934713408
    %v164 = vunpack.c.0.s8 %v163
    %v165 = vlaneseq
    %v166 = vshrl.u32 %v165, 7
    %v167 = vsub.s32 %v164, %v166
    %v168 = vrot.slane %v160, %v167
    %v170 = vunpack.c.l.s4 1934713408
    %v171 = vunpack.c.0.s8 %v170
    %v172 = vlaneseq
    %v173 = vshrl.u32 %v172, 7
    %v174 = vsub.s32 %v171, %v173
    %v175 = vrot.slane %v161, %v174
    %v176 = vcombine.high %v152, 0.0
    %v177 = vcombine.high %v159, 0.0
    %v178 = vcombine.high %v168, 0.0
    %v179 = vcombine.high %v175, 0.0
    %181 = vrot.lane.b32.xlu0 %v176, 32
    %v182 = vpop.permute.xlu0 %181
    %185 = vrot.lane.b32.xlu0 %v159, 64
    %v186 = vpop.permute.xlu0 %185
    %189 = vrot.lane.b32.xlu0 %v177, 96
    %v190 = vpop.permute.xlu0 %189
    %193 = vrot.lane.b32.xlu0 %v178, 32
    %v194 = vpop.permute.xlu0 %193
    %197 = vrot.lane.b32.xlu0 %v175, 64
    %v198 = vpop.permute.xlu0 %197
    %201 = vrot.lane.b32.xlu0 %v179, 96
    %v202 = vpop.permute.xlu0 %201
    %vm204 = vcmask 261120
    %v205 = vsel %vm204, %v152, %v182
    %vm206 = vcmask 523264
    %v207 = vsel %vm206, %v205, %v186
    %vm208 = vcmask 785408
    %v209 = vsel %vm208, %v207, %v190
    %v210 = vsel %vm204, %v168, %v194
    %v211 = vsel %vm206, %v210, %v198
    %v212 = vsel %vm208, %v211, %v202
    %v215 = vcombine.low %v209, %v212
    %v217 = vunpack.c.l.s4 1983009808
    %v218 = vunpack.c.0.s8 %v217
    %v219 = vlaneseq
    %v220 = vshrl.u32 %v219, 7
    %v221 = vsub.s32 %v218, %v220
    %v222 = vrot.slane %v215, %v221
    %224 = vst [vmem:[#allocation2] sm:$0xf] %v222
    // Predicated region
    $region14: #{tpu_custom_call.1} parent=1 // pred_check
      _
    $region15: #{tpu_custom_call.1} parent=1 // pred_check_branch
      %226 = sbr.rel (0) target = $region17
    $region16: #{tpu_custom_call.1} parent=1 // pred_region
      %s228 = ssub.s32 64, 64
      %229 = vsyncadd [#allocation3], %s228
      %s231 = sshll.u32 [#allocation2], 4
      %s232 = int_to_ptr.vmem [resolvable:$true] %s231
      %234 = dma.vmem_to_hbm [thread:$0]  %s232, 64, %s3, [#allocation3]
    $region17: #{tpu_custom_call.1} parent=1 // pred_fallthru
      _
    // Predicated region
    $region18: #{tpu_custom_call.1} parent=1 // pred_check
      _
    $region19: #{tpu_custom_call.1} parent=1 // pred_check_branch
      %236 = sbr.rel (0) target = $region21
    $region20: #{tpu_custom_call.1} parent=1 // pred_region
      %237 = dma.done [#allocation3], 64
    $region21: #{tpu_custom_call.1} parent=1 // pred_fallthru
      _
    %238 = vsyncpa [#allocation3], 1

</llo_original>
